<compile_context>
chip_gen: v5e
topology: v5e:2x2
jax: 0.10.0
libtpu: 0.0.40
codegen_flags: <defaults>
</compile_context>

<pallas_src>
import numpy as np
import jax
import jax.numpy as jnp
from jax import lax
from jax.experimental import pallas as pl
from jax.experimental.pallas import tpu as pltpu

EPS = 1e-5
# Set to jnp.bfloat16 on v6e/v7x to halve HBM traffic for the dominant operand
# (matmul still accumulates in f32); kept f32 here to match the f32 PyTorch module bit-for-bit.
MATMUL_DTYPE = jnp.float32


def _conv_stats_kernel(a_ref, w_ref, conv_ref, sum_ref, ssq_ref):
    """Pass 1: transposed conv-matmul + partial BatchNorm statistics.

    a_ref:    [K, THW]    im2col patches (spatial on the lane axis)
    w_ref:    [Cout, K]   weights, resident across the whole grid
    conv_ref: [Cout, THW] conv output tile (lane-dense store)
    sum_ref / ssq_ref: [Cout, 1] per-channel accumulators, resident across the grid
    """
    @pl.when(jnp.logical_and(pl.program_id(0) == 0, pl.program_id(1) == 0))
    def _():
        sum_ref[...] = jnp.zeros_like(sum_ref)
        ssq_ref[...] = jnp.zeros_like(ssq_ref)

    conv = jnp.dot(w_ref[...], a_ref[...], preferred_element_type=jnp.float32)
    conv_ref[...] = conv
    # Lane reductions land on the XLU slot -> essentially free next to the matmul.
    sum_ref[...] += jnp.sum(conv, axis=1, keepdims=True)
    ssq_ref[...] += jnp.sum(conv * conv, axis=1, keepdims=True)


def _bn_apply_kernel(conv_ref, scale_ref, shift_ref, o_ref):
    """Pass 2: purely elementwise, embarrassingly parallel normalization."""
    o_ref[...] = (conv_ref[...] * scale_ref[...] + shift_ref[...]).astype(o_ref.dtype)


def _round_up(x, m):
    return (x + m - 1) // m * m


def reset_layer_forward(x_nchw, conv_w, conv_b, bn_gamma, bn_beta, *, thw_target=512):
    """x_nchw: [N, Cin, H, W]; conv_w: [Cout, Cin, 3, 3] (stride=1, pad=1)."""
    N, Cin, H, W = x_nchw.shape
    Cout, _, KH, KW = conv_w.shape
    assert (KH, KW) == (3, 3)
    K = KH * KW * Cin
    HW = H * W
    M = N * HW  # true number of batch-norm samples per channel

    # Conv bias cancels exactly under training-mode BatchNorm (mean subtraction),
    # so it is intentionally not used in the kernels.
    del conv_b

    # ---- glue (plain JAX): shifted-slice im2col, kept in NCHW channel-major order ----
    # TODO(synk): the remaining 9x patch materialization in HBM could be removed by doing
    # the 9 shifted-slice matmuls inside the kernel from the padded activation; that needs
    # halo'd (manually DMA'd) input blocks, kept out here for robustness.
    xp = jnp.pad(x_nchw, ((0, 0), (0, 0), (1, 1), (1, 1)))
    patches = [xp[:, :, dy:dy + H, dx:dx + W] for dy in range(KH) for dx in range(KW)]
    a = jnp.concatenate(patches, axis=1).reshape(N, K, HW)          # [N, K, H*W]

    # Tile the spatial (lane) axis; pad with zeros. Zero columns contribute 0 to both
    # sum and sum-of-squares, so stats stay exact when divided by the true M below.
    thw = min(_round_up(HW, 128), _round_up(thw_target, 128))
    hw_pad = _round_up(HW, thw)
    if hw_pad != HW:
        a = jnp.pad(a, ((0, 0), (0, 0), (0, hw_pad - HW)))
    num_t = hw_pad // thw

    a = a.astype(MATMUL_DTYPE)
    # [Cout, Cin, KH, KW] -> [Cout, KH, KW, Cin] -> [Cout, K]   (matches patch order)
    w_t = jnp.transpose(conv_w, (0, 2, 3, 1)).reshape(Cout, K).astype(MATMUL_DTYPE)

    # ---- Pass 1: conv (lane-dense, tiled, pipelined) + partial stats ----
    conv_t, ch_sum, ch_ssq = pl.pallas_call(
        _conv_stats_kernel,
        out_shape=(
            jax.ShapeDtypeStruct((N, Cout, hw_pad), jnp.float32),
            jax.ShapeDtypeStruct((Cout, 1), jnp.float32),
            jax.ShapeDtypeStruct((Cout, 1), jnp.float32),
        ),
        grid_spec=pltpu.PrefetchScalarGridSpec(
            num_scalar_prefetch=0,
            grid=(N, num_t),
            in_specs=[
                pl.BlockSpec((None, K, thw), lambda n, t: (n, 0, t)),   # A_T tile
                pl.BlockSpec((Cout, K), lambda n, t: (0, 0)),           # weights, resident
            ],
            out_specs=(
                pl.BlockSpec((None, Cout, thw), lambda n, t: (n, 0, t)),  # conv tile
                pl.BlockSpec((Cout, 1), lambda n, t: (0, 0)),             # sum accumulator
                pl.BlockSpec((Cout, 1), lambda n, t: (0, 0)),             # sumsq accumulator
            ),
        ),
        compiler_params=pltpu.CompilerParams(
            # accumulator outputs are revisited on every step -> both axes arbitrary
            dimension_semantics=("arbitrary", "arbitrary"),
            vmem_limit_bytes=48 * 1024 * 1024,
        ),
    )(a, w_t)

    # ---- tiny per-channel glue (f32): finalize batch stats, fold gamma/beta ----
    inv_m = 1.0 / float(M)
    mean = ch_sum * inv_m                                        # [Cout, 1]
    var = jnp.maximum(ch_ssq * inv_m - mean * mean, 0.0)         # biased variance
    inv_std = lax.rsqrt(var + EPS)
    scale = bn_gamma.reshape(Cout, 1).astype(jnp.float32) * inv_std
    shift = bn_beta.reshape(Cout, 1).astype(jnp.float32) - mean * scale

    # ---- Pass 2: elementwise normalize, fully parallel over the grid ----
    y_t = pl.pallas_call(
        _bn_apply_kernel,
        out_shape=jax.ShapeDtypeStruct((N, Cout, hw_pad), jnp.float32),
        grid_spec=pltpu.PrefetchScalarGridSpec(
            num_scalar_prefetch=0,
            grid=(N, num_t),
            in_specs=[
                pl.BlockSpec((None, Cout, thw), lambda n, t: (n, 0, t)),
                pl.BlockSpec((Cout, 1), lambda n, t: (0, 0)),
                pl.BlockSpec((Cout, 1), lambda n, t: (0, 0)),
            ],
            out_specs=pl.BlockSpec((None, Cout, thw), lambda n, t: (n, 0, t)),
        ),
        compiler_params=pltpu.CompilerParams(
            dimension_semantics=("parallel", "parallel"),
            vmem_limit_bytes=48 * 1024 * 1024,
        ),
    )(conv_t, scale, shift)

    # Already channel-major: drop spatial padding and un-flatten H*W. No transpose needed.
    return y_t[:, :, :HW].reshape(N, Cout, H, W)


def _reference(x_nchw, conv_w, conv_b, bn_gamma, bn_beta):
    """Pure-JAX reference: conv2d (WITH bias) + training-mode BatchNorm2d."""
    conv = lax.conv_general_dilated(
        x_nchw, conv_w, window_strides=(1, 1), padding=((1, 1), (1, 1)),
        dimension_numbers=("NCHW", "OIHW", "NCHW"))
    conv = conv + conv_b[None, :, None, None]
    mean = jnp.mean(conv, axis=(0, 2, 3), keepdims=True)
    var = jnp.mean((conv - mean) ** 2, axis=(0, 2, 3), keepdims=True)
    xn = (conv - mean) / jnp.sqrt(var + EPS)
    return xn * bn_gamma[None, :, None, None] + bn_beta[None, :, None, None]


if __name__ == "__main__":
    # Small, module-consistent shapes: layer = Conv2d(4 -> 8, 3x3, pad=1)
    N, Cin, H, W = 2, 4, 16, 16
    Cout, KH, KW = 8, 3, 3

    key = jax.random.PRNGKey(0)
    kx, kw, kb, kg, kbe = jax.random.split(key, 5)

    x = jax.random.normal(kx, (N, Cin, H, W), dtype=jnp.float32)
    conv_w = 0.1 * jax.random.normal(kw, (Cout, Cin, KH, KW), dtype=jnp.float32)
    conv_b = 0.1 * jax.random.normal(kb, (Cout,), dtype=jnp.float32)
    # set_stats(goal_mean, goal_std): bn.bias <- goal_mean, bn.weight <- goal_std
    bn_gamma = 1.0 + 0.1 * jax.random.normal(kg, (Cout,), dtype=jnp.float32)  # goal_std
    bn_beta = 0.1 * jax.random.normal(kbe, (Cout,), dtype=jnp.float32)        # goal_mean

    y = reset_layer_forward(x, conv_w, conv_b, bn_gamma, bn_beta)
    y = jax.block_until_ready(y)

    y_ref = _reference(x, conv_w, conv_b, bn_gamma, bn_beta)
    np.testing.assert_allclose(np.asarray(y), np.asarray(y_ref),
                               rtol=5e-4, atol=5e-4)

    print("KERNEL_OK")
</pallas_src>

<mosaic_0001>
module attributes {stable_mosaic.version = 11 : i64} {
  func.func @_conv_stats_kernel(%arg0: i32, %arg1: i32, %arg2: memref<1x36x256xf32, #tpu.memory_space<vmem>>, %arg3: memref<8x36xf32, #tpu.memory_space<vmem>>, %arg4: memref<1x8x256xf32, #tpu.memory_space<vmem>>, %arg5: memref<8x1xf32, #tpu.memory_space<vmem>>, %arg6: memref<8x1xf32, #tpu.memory_space<vmem>>) attributes {dimension_semantics = [#tpu.dimension_semantics<arbitrary>, #tpu.dimension_semantics<arbitrary>], iteration_bounds = array<i64: 2, 1>, scalar_prefetch = 0 : i64, scratch_operands = 0 : i64, tpu.core_type = #tpu.core_type<tc>, window_params = [{transform_indices = @transform_0, window_bounds = array<i64: 1, 36, 256>}, {pipeline_mode = #tpu.pipeline_mode<synchronous>, transform_indices = @transform_1, window_bounds = array<i64: 8, 36>}, {transform_indices = @transform_2, window_bounds = array<i64: 1, 8, 256>}, {pipeline_mode = #tpu.pipeline_mode<synchronous>, transform_indices = @transform_3, window_bounds = array<i64: 8, 1>}, {pipeline_mode = #tpu.pipeline_mode<synchronous>, transform_indices = @transform_4, window_bounds = array<i64: 8, 1>}]} {
    %c0_i32 = arith.constant 0 : i32
    %0 = arith.cmpi eq, %arg0, %c0_i32 : i32
    %c0_i32_0 = arith.constant 0 : i32
    %1 = arith.cmpi eq, %arg1, %c0_i32_0 : i32
    %2 = arith.andi %0, %1 : i1
    %3 = arith.extui %2 : i1 to i32
    %c0_i32_1 = arith.constant 0 : i32
    %4 = arith.cmpi ne, %3, %c0_i32_1 : i32
    scf.if %4 {
      %cst_19 = arith.constant 0.000000e+00 : f32
      %23 = vector.broadcast %cst_19 : f32 to vector<8x1xf32>
      %c0_20 = arith.constant 0 : index
      %c0_21 = arith.constant 0 : index
      %24 = vector.load %arg5[%c0_20, %c0_21] : memref<8x1xf32, #tpu.memory_space<vmem>>, vector<8x1xf32>
      tpu.vector_store %arg5[%c0_20, %c0_21], %23 {strides = array<i32>} : memref<8x1xf32, #tpu.memory_space<vmem>>, vector<8x1xf32>,
      %cst_22 = arith.constant 0.000000e+00 : f32
      %25 = vector.broadcast %cst_22 : f32 to vector<8x1xf32>
      %c0_23 = arith.constant 0 : index
      %c0_24 = arith.constant 0 : index
      %26 = vector.load %arg6[%c0_23, %c0_24] : memref<8x1xf32, #tpu.memory_space<vmem>>, vector<8x1xf32>
      tpu.vector_store %arg6[%c0_23, %c0_24], %25 {strides = array<i32>} : memref<8x1xf32, #tpu.memory_space<vmem>>, vector<8x1xf32>,
    } else {
    }
    %c0 = arith.constant 0 : index
    %c0_2 = arith.constant 0 : index
    %5 = vector.load %arg3[%c0, %c0_2] : memref<8x36xf32, #tpu.memory_space<vmem>>, vector<8x36xf32>
    %c0_3 = arith.constant 0 : index
    %c0_4 = arith.constant 0 : index
    %c0_5 = arith.constant 0 : index
    %6 = vector.load %arg2[%c0_3, %c0_4, %c0_5] : memref<1x36x256xf32, #tpu.memory_space<vmem>>, vector<1x36x256xf32>
    %7 = vector.shape_cast %6 : vector<1x36x256xf32> to vector<36x256xf32>
    %cst = arith.constant dense<0.000000e+00> : vector<8x256xf32>
    %8 = tpu.matmul %5, %7, %cst {dimension_numbers = #tpu.dot_dimension_numbers<[1], [0], [0], [1], [0, 0, 1, 1], [], []>} : vector<8x36xf32>, vector<36x256xf32>, vector<8x256xf32> -> vector<8x256xf32>
    %c0_6 = arith.constant 0 : index
    %c0_7 = arith.constant 0 : index
    %c0_8 = arith.constant 0 : index
    %9 = vector.load %arg4[%c0_6, %c0_7, %c0_8] : memref<1x8x256xf32, #tpu.memory_space<vmem>>, vector<1x8x256xf32>
    %10 = vector.shape_cast %9 : vector<1x8x256xf32> to vector<8x256xf32>
    %11 = vector.shape_cast %8 : vector<8x256xf32> to vector<1x8x256xf32>
    tpu.vector_store %arg4[%c0_6, %c0_7, %c0_8], %11 {strides = array<i32>} : memref<1x8x256xf32, #tpu.memory_space<vmem>>, vector<1x8x256xf32>,
    %c0_9 = arith.constant 0 : index
    %c0_10 = arith.constant 0 : index
    %12 = vector.load %arg5[%c0_9, %c0_10] : memref<8x1xf32, #tpu.memory_space<vmem>>, vector<8x1xf32>
    %cst_11 = arith.constant dense<0.000000e+00> : vector<8xf32>
    %13 = vector.multi_reduction <add>, %8, %cst_11 [1] : vector<8x256xf32> to vector<8xf32>
    %14 = vector.shape_cast %13 : vector<8xf32> to vector<8x1xf32>
    %15 = arith.addf %12, %14 : vector<8x1xf32>
    %c0_12 = arith.constant 0 : index
    %c0_13 = arith.constant 0 : index
    %16 = vector.load %arg5[%c0_12, %c0_13] : memref<8x1xf32, #tpu.memory_space<vmem>>, vector<8x1xf32>
    tpu.vector_store %arg5[%c0_12, %c0_13], %15 {strides = array<i32>} : memref<8x1xf32, #tpu.memory_space<vmem>>, vector<8x1xf32>,
    %c0_14 = arith.constant 0 : index
    %c0_15 = arith.constant 0 : index
    %17 = vector.load %arg6[%c0_14, %c0_15] : memref<8x1xf32, #tpu.memory_space<vmem>>, vector<8x1xf32>
    %18 = arith.mulf %8, %8 : vector<8x256xf32>
    %cst_16 = arith.constant dense<0.000000e+00> : vector<8xf32>
    %19 = vector.multi_reduction <add>, %18, %cst_16 [1] : vector<8x256xf32> to vector<8xf32>
    %20 = vector.shape_cast %19 : vector<8xf32> to vector<8x1xf32>
    %21 = arith.addf %17, %20 : vector<8x1xf32>
    %c0_17 = arith.constant 0 : index
    %c0_18 = arith.constant 0 : index
    %22 = vector.load %arg6[%c0_17, %c0_18] : memref<8x1xf32, #tpu.memory_space<vmem>>, vector<8x1xf32>
    tpu.vector_store %arg6[%c0_17, %c0_18], %21 {strides = array<i32>} : memref<8x1xf32, #tpu.memory_space<vmem>>, vector<8x1xf32>,
    return
  }
  func.func @transform_0(%arg0: i32, %arg1: i32) -> (i32, i32, i32) {
    %c0_i32 = arith.constant 0 : i32
    %c0_i32_0 = arith.constant 0 : i32
    return %arg0, %c0_i32, %arg1 : i32, i32, i32
  }
  func.func @transform_1(%arg0: i32, %arg1: i32) -> (i32, i32) {
    %c0_i32 = arith.constant 0 : i32
    %c0_i32_0 = arith.constant 0 : i32
    %c0_i32_1 = arith.constant 0 : i32
    return %c0_i32, %c0_i32_0 : i32, i32
  }
  func.func @transform_2(%arg0: i32, %arg1: i32) -> (i32, i32, i32) {
    %c0_i32 = arith.constant 0 : i32
    %c0_i32_0 = arith.constant 0 : i32
    return %arg0, %c0_i32, %arg1 : i32, i32, i32
  }
  func.func @transform_3(%arg0: i32, %arg1: i32) -> (i32, i32) {
    %c0_i32 = arith.constant 0 : i32
    %c0_i32_0 = arith.constant 0 : i32
    %c0_i32_1 = arith.constant 0 : i32
    return %c0_i32, %c0_i32_0 : i32, i32
  }
  func.func @transform_4(%arg0: i32, %arg1: i32) -> (i32, i32) {
    %c0_i32 = arith.constant 0 : i32
    %c0_i32_0 = arith.constant 0 : i32
    %c0_i32_1 = arith.constant 0 : i32
    return %c0_i32, %c0_i32_0 : i32, i32
  }
}

</mosaic_0001>

<llo_original>
// kernel: tpu_custom_call.1
$region0: #{tpu_custom_call.1}
  #allocation0 [shape = 'u32[]', space=smem, size = 0x4, offset = 0x4, fixed_abs, tag = 'smem constant byte address 0x4 - core index']
  #allocation1 [shape = 'u32[72,128]{1,0:T(1,128)}', space=vmem, size = 0x9000, scoped, tag = 'internal scratch']
  %s0 = inlined_call_operand.vmem [shape: f32[2,36,256], index: 0, kind: input, shape index: {}]
  %s1 = inlined_call_operand.vmem [shape: f32[8,36], index: 1, kind: input, shape index: {}]
  %s2 = inlined_call_operand.hbm [shape: f32[2,8,256], index: 2, kind: output, shape index: {0}]
  %s3 = inlined_call_operand.vmem [shape: f32[8,1], index: 3, kind: output, shape index: {1}]
  %s4 = inlined_call_operand.vmem [shape: f32[8,1], index: 4, kind: output, shape index: {2}]
  %5 = xla_tuple %s2, %s3, %s4
  %s6 = sld [smem:[#allocation0]]
  $region61: #{tpu_custom_call.1} parent=0
    _
  %s8 = ssub.s32 1, %s6
  %s9 = scalar_select 0, %s8, %s6
  $region1: #{tpu_custom_call.1} parent=0
    #allocation2 [shape = 'u8[16384]{0}', space=vmem, size = 0x4000, scoped, tag = 'output window, operand 0']
    #allocation3 [shape = 's32[2]{0}', space=sflag, size = 0x8, scoped, tag = 'scoped memory for tpu_custom_call.1']
    %10 = vsyncpa [#allocation3], 0
    %s11 = scalar_lea.sflag [#allocation3], 1
    %12 = vsyncpa %s11, 0
    loop: start=0, step=1, limit=4
    $region2: #{tpu_custom_call.1} parent=1 // loop_pre_header
      _
    $region3: #{tpu_custom_call.1} parent=1 // loop_header
      %s14 = sphi 0, %s18
      %p15 = scmp.ge.s32.totalorder %s14, 4
      %s21 = sphi 0, %s33
      %s22 = sphi 0, %s29
      %s23 = sphi 0, %s21
      %s24 = sphi 0, %s22
      %s25 = sphi 0, %s23
      %s26 = sphi 0, %s24
      %s38 = sphi 0, %s40
      %s41 = sphi 0, %s38
      %s42 = sphi 0, %s41
      %s58 = sphi 0, %s42
      %s62 = sphi 0, %s62
      %s64 = sphi 0, %s62
      %s65 = sphi 0, %s64
      %s79 = sphi 0, %s65
      %s87 = sphi 0, %s89
      %s90 = sphi 0, %s87
      %s91 = sphi 0, %s90
      %s107 = sphi 0, %s91
      %s111 = sphi 0, %s111
      %s113 = sphi 0, %s111
      %s114 = sphi 0, %s113
      %s128 = sphi 0, %s114
      %s132 = sphi 0, %s132
      %s134 = sphi 0, %s132
      %s135 = sphi 0, %s134
      %s149 = sphi 0, %s135
    $region4: #{tpu_custom_call.1} parent=1 // loop_header_branch
      %17 = sbr.rel (%p15) target = $region8
    $region5: #{tpu_custom_call.1} parent=1 // loop_body
      %s19 = ssub.s32 %s14, 1
      %s20 = ssub.s32 %s14, 2
      %s27 = sadd.s32 1, %s22
      %p28 = scmp.ge.s32.totalorder %s27, 1
      %s29 = scalar_select %p28, 0, %s27
      %s30 = sadd.s32 1, %s21
      %s31 = scalar_select %p28, %s30, %s21
      %p32 = scmp.ge.s32.totalorder %s31, 2
      %s33 = scalar_select %p32, 0, %s31
      %s34 = ssub.s32 %s21, %s33
      %s35 = ssub.s32 %s22, %s29
      %s36 = sor.u32 %s34, %s35
      %p37 = scmp.eq.s32.totalorder %s36, 0
      %s39 = sadd.s32 %s38, 1
      %s40 = scalar_select %p37, %s38, %s39
      %p43 = pneg %p37
      %p44 = scmp.eq.s32.totalorder %s14, 1
      %p45 = por %p43, %p44
      %p46 = scmp.ne.s32.totalorder %s38, %s41
      %p47 = scmp.eq.s32.totalorder %s14, 0
      %p48 = por %p46, %p47
      %p49 = scmp.ne.s32.totalorder %s38, %s41
      %p50 = scmp.eq.s32.totalorder %s19, 1
      %p51 = por %p49, %p50
      %p52 = scmp.ne.s32.totalorder %s41, %s42
      %p53 = scmp.eq.s32.totalorder %s19, 0
      %p54 = por %p52, %p53
      %p55 = scmp.ne.s32.totalorder %s41, %s42
      %p56 = scmp.eq.s32.totalorder %s20, 1
      %p57 = por %p55, %p56
      %p59 = scmp.ne.s32.totalorder %s42, %s58
      %p60 = scmp.eq.s32.totalorder %s20, 0
      %p61 = por %p59, %p60
      %s63 = sadd.s32 %s62, 1
      %p66 = scmp.eq.s32.totalorder %s14, 1
      %p67 = scmp.ne.s32.totalorder %s62, %s64
      %p68 = scmp.eq.s32.totalorder %s14, 0
      %p69 = por %p67, %p68
      %p70 = scmp.ne.s32.totalorder %s62, %s64
      %p71 = scmp.eq.s32.totalorder %s19, 1
      %p72 = por %p70, %p71
      %p73 = scmp.ne.s32.totalorder %s64, %s65
      %p74 = scmp.eq.s32.totalorder %s19, 0
      %p75 = por %p73, %p74
      %p76 = scmp.ne.s32.totalorder %s64, %s65
      %p77 = scmp.eq.s32.totalorder %s20, 1
      %p78 = por %p76, %p77
      %p80 = scmp.ne.s32.totalorder %s65, %s79
      %p81 = scmp.eq.s32.totalorder %s20, 0
      %p82 = por %p80, %p81
      %s83 = ssub.s32 %s21, %s33
      %s84 = ssub.s32 %s22, %s29
      %s85 = sor.u32 %s83, %s84
      %p86 = scmp.eq.s32.totalorder %s85, 0
      %s88 = sadd.s32 %s87, 1
      %s89 = scalar_select %p86, %s87, %s88
      %p92 = pneg %p86
      %p93 = scmp.eq.s32.totalorder %s14, 1
      %p94 = por %p92, %p93
      %p95 = scmp.ne.s32.totalorder %s87, %s90
      %p96 = scmp.eq.s32.totalorder %s14, 0
      %p97 = por %p95, %p96
      %p98 = scmp.ne.s32.totalorder %s87, %s90
      %p99 = scmp.eq.s32.totalorder %s19, 1
      %p100 = por %p98, %p99
      %p101 = scmp.ne.s32.totalorder %s90, %s91
      %p102 = scmp.eq.s32.totalorder %s19, 0
      %p103 = por %p101, %p102
      %p104 = scmp.ne.s32.totalorder %s90, %s91
      %p105 = scmp.eq.s32.totalorder %s20, 1
      %p106 = por %p104, %p105
      %p108 = scmp.ne.s32.totalorder %s91, %s107
      %p109 = scmp.eq.s32.totalorder %s20, 0
      %p110 = por %p108, %p109
      %s112 = sadd.s32 %s111, 1
      %p115 = scmp.eq.s32.totalorder %s14, 1
      %p116 = scmp.ne.s32.totalorder %s111, %s113
      %p117 = scmp.eq.s32.totalorder %s14, 0
      %p118 = por %p116, %p117
      %p119 = scmp.ne.s32.totalorder %s111, %s113
      %p120 = scmp.eq.s32.totalorder %s19, 1
      %p121 = por %p119, %p120
      %p122 = scmp.ne.s32.totalorder %s113, %s114
      %p123 = scmp.eq.s32.totalorder %s19, 0
      %p124 = por %p122, %p123
      %p125 = scmp.ne.s32.totalorder %s113, %s114
      %p126 = scmp.eq.s32.totalorder %s20, 1
      %p127 = por %p125, %p126
      %p129 = scmp.ne.s32.totalorder %s114, %s128
      %p130 = scmp.eq.s32.totalorder %s20, 0
      %p131 = por %p129, %p130
      %s133 = sadd.s32 %s132, 1
      %p136 = scmp.eq.s32.totalorder %s14, 1
      %p137 = scmp.ne.s32.totalorder %s132, %s134
      %p138 = scmp.eq.s32.totalorder %s14, 0
      %p139 = por %p137, %p138
      %p140 = scmp.ne.s32.totalorder %s132, %s134
      %p141 = scmp.eq.s32.totalorder %s19, 1
      %p142 = por %p140, %p141
      %p143 = scmp.ne.s32.totalorder %s134, %s135
      %p144 = scmp.eq.s32.totalorder %s19, 0
      %p145 = por %p143, %p144
      %p146 = scmp.ne.s32.totalorder %s134, %s135
      %p147 = scmp.eq.s32.totalorder %s20, 1
      %p148 = por %p146, %p147
      %p150 = scmp.ne.s32.totalorder %s135, %s149
      %p151 = scmp.eq.s32.totalorder %s20, 0
      %p152 = por %p150, %p151
      %p153 = scmp.le.s32.totalorder 1, %s14
      %p154 = scmp.lt.s32.totalorder %s14, 3
      %p155 = pnand %p153, %p154
      %p156 = pneg %p155
      // Predicated region
      $region9: #{tpu_custom_call.1} parent=5 // pred_check
        _
      $region10: #{tpu_custom_call.1} parent=5 // pred_check_branch
        %158 = sbr.rel (%p155) target = $region12
      $region11: #{tpu_custom_call.1} parent=5 // pred_region
        %s159 = ssub.s32 %s14, 1
        // Predicated region
        $region13: #{tpu_custom_call.1} parent=11 // pred_check
          %p160 = pneg %p75
        $region14: #{tpu_custom_call.1} parent=11 // pred_check_branch
          %162 = sbr.rel (%p160) target = $region16
        $region15: #{tpu_custom_call.1} parent=11 // pred_region
          _
        $region16: #{tpu_custom_call.1} parent=11 // pred_fallthru
          _
      $region12: #{tpu_custom_call.1} parent=5 // pred_fallthru
        _
      %p163 = scmp.lt.s32.totalorder %s14, 2
      // Predicated region
      $region17: #{tpu_custom_call.1} parent=5 // pred_check
        %p164 = pneg %p163
      $region18: #{tpu_custom_call.1} parent=5 // pred_check_branch
        %166 = sbr.rel (%p164) target = $region20
      $region19: #{tpu_custom_call.1} parent=5 // pred_region
        // Predicated region
        $region21: #{tpu_custom_call.1} parent=19 // pred_check
          %p167 = pneg %p48
        $region22: #{tpu_custom_call.1} parent=19 // pred_check_branch
          %169 = sbr.rel (%p167) target = $region24
        $region23: #{tpu_custom_call.1} parent=19 // pred_region
          %s170 = smul.u32 2, %s22
          %p171 = scmp.lt.s32.totalorder %s21, 1
          %s172 = scalar_select %p171, %s21, 1
          %p173 = scmp.lt.s32.totalorder %s170, 1
          %s174 = scalar_select %p173, %s170, 1
          %s175 = smul.addr %s172, 10
          %s176 = sadd.s32 %s174, %s175
          %s177 = smul.addr %s176, 8
          %s178 = scalar_lea.vmem %s0, %s177
          %s179 = smul.u32 2, %s22
        $region24: #{tpu_custom_call.1} parent=19 // pred_fallthru
          _
      $region20: #{tpu_custom_call.1} parent=5 // pred_fallthru
        _
      %p180 = scmp.le.s32.totalorder 1, %s14
      %p181 = scmp.lt.s32.totalorder %s14, 3
      %p182 = pnand %p180, %p181
      %p183 = pneg %p182
      // Predicated region
      $region25: #{tpu_custom_call.1} parent=5 // pred_check
        _
      $region26: #{tpu_custom_call.1} parent=5 // pred_check_branch
        %185 = sbr.rel (%p182) target = $region28
      $region27: #{tpu_custom_call.1} parent=5 // pred_region
        %s186 = ssub.s32 %s14, 1
        %s187 = smul.u32 2, %s24
        %p188 = scmp.lt.s32.totalorder %s23, 1
        %s189 = scalar_select %p188, %s23, 1
        %p190 = scmp.lt.s32.totalorder %s187, 1
        %s191 = scalar_select %p190, %s187, 1
        %s192 = smul.addr %s189, 10
        %s193 = sadd.s32 %s191, %s192
        %s194 = smul.addr %s193, 8
        %s195 = scalar_lea.vmem %s0, %s194
        %p196 = pneg %p54
        %p197 = pneg %p51
        %p198 = pneg %p75
        %p199 = pneg %p72
        %p200 = pneg %p103
        %p201 = pneg %p100
        %s202 = sand.u32 %s90, 1
        %s203 = scalar_lea.sflag [#allocation3], %s202
        %s204 = sand.u32 %s90, 1
        %s205 = smul.addr %s204, 16
        %s206 = scalar_lea.vmem [#allocation2], %s205
        %p207 = pneg %p124
        %p208 = pneg %p121
        %p209 = pneg %p145
        %p210 = pneg %p142
        %s211 = smul.u32 2, %s24
        %p212 = scmp.lt.s32.totalorder %s23, 1
        %s213 = scalar_select %p212, %s23, 1
        %p214 = scmp.lt.s32.totalorder %s211, 1
        %s215 = scalar_select %p214, %s211, 1
        %s216 = smul.addr %s213, 10
        %s217 = sadd.s32 %s215, %s216
        %s218 = smul.addr %s217, 8
        %s219 = scalar_lea.vmem %s0, %s218
        %s220 = smul.u32 2, %s24
        %s221 = smul.u32 2, %s24
        %p222 = scmp.eq.s32.totalorder %s23, 0
        %p223 = scmp.eq.s32.totalorder %s24, 0
        %p224 = pnand %p222, %p223
        %p225 = pneg %p224
        // Predicated region
        $region29: #{tpu_custom_call.1} parent=27 // pred_check
          _
        $region30: #{tpu_custom_call.1} parent=27 // pred_check_branch
          %227 = sbr.rel (%p224) target = $region32
        $region31: #{tpu_custom_call.1} parent=27 // pred_region
          %vm228 = vcmask 7168
          %229 = vst.msk [vmem:[%s3] sm:$0xff] %vm228, 0.0
          %230 = vst.msk [vmem:[%s4] sm:$0xff] %vm228, 0.0
        $region32: #{tpu_custom_call.1} parent=27 // pred_fallthru
          _
        %v231 = vld [vmem:[%s1] sm:$0xff]
        %v232 = vld [vmem:[%s219] sm:$0xff]
        %v233 = vld [vmem:[%s219 + $0x8] sm:$0xff]
        %v234 = vld [vmem:[%s219 + $0x10] sm:$0xff]
        %v235 = vld [vmem:[%s219 + $0x18] sm:$0xff]
        %v236 = vld [vmem:[%s219 + $0x20] sm:$0xff]
        %v237 = vld [vmem:[%s219 + $0x28] sm:$0xff]
        %v238 = vld [vmem:[%s219 + $0x30] sm:$0xff]
        %v239 = vld [vmem:[%s219 + $0x38] sm:$0xff]
        %v240 = vld [vmem:[%s219 + $0x40] sm:$0xf]
        %v241 = vld [vmem:[%s219 + $0x48] sm:$0xf]
        %vm242 = vcmask 293888
        %v244 = vsel %vm242, %v231, 0
        %vm246 = vcmask 1043456
        %v248 = vsel %vm246, %v240, 0
        %v251 = vsel %vm246, %v241, 0
        %253 = vmatpush.msra.mxu0 0.0
        %254 = vmatpush.msra.mxu0 0.0
        %255 = vmatpush.msra.mxu0 0.0
        %256 = vmatpush.msra.mxu0 0.0
        %257 = vmatpush.msra.mxu0 0.0
        %258 = vmatpush.msra.mxu0 0.0
        %259 = vmatpush.msra.mxu0 0.0
        %260 = vmatpush.msra.mxu0 0.0
        %261 = vmatpush.msra.mxu0 0.0
        %262 = vmatpush.msra.mxu0 0.0
        %263 = vmatpush.msra.mxu0 0.0
        %264 = vmatpush.msra.mxu0 %v248
        %265 = vmatpush.msra.mxu0 %v238
        %266 = vmatpush.msra.mxu0 %v236
        %267 = vmatpush.msra.mxu0 %v234
        %268 = vmatpush.msra.mxu0 %v232
        %269 = vmatmul.f32.gmra.mxu0 %v244
        %v270 = vpop.f32.mrf.mxu0
        %v271 = vadd.f32 0.0, %v270
        %272 = vdwg.mxu0
        %273 = vmatpush.msra.mxu0 0.0
        %274 = vmatpush.msra.mxu0 0.0
        %275 = vmatpush.msra.mxu0 0.0
        %276 = vmatpush.msra.mxu0 0.0
        %277 = vmatpush.msra.mxu0 0.0
        %278 = vmatpush.msra.mxu0 0.0
        %279 = vmatpush.msra.mxu0 0.0
        %280 = vmatpush.msra.mxu0 0.0
        %281 = vmatpush.msra.mxu0 0.0
        %282 = vmatpush.msra.mxu0 0.0
        %283 = vmatpush.msra.mxu0 0.0
        %284 = vmatpush.msra.mxu0 %v251
        %285 = vmatpush.msra.mxu0 %v239
        %286 = vmatpush.msra.mxu0 %v237
        %287 = vmatpush.msra.mxu0 %v235
        %288 = vmatpush.msra.mxu0 %v233
        %289 = vmatmul.f32.gmra.mxu0 %v244
        %v290 = vpop.f32.mrf.mxu0
        %v291 = vadd.f32 0.0, %v290
        %292 = vdwg.mxu0
        %293 = vst [vmem:[%s206] sm:$0xff] %v271
        %294 = vst [vmem:[%s206 + $0x8] sm:$0xff] %v291
        %v295 = vld [vmem:[%s3] sm:$0xff]
        %v296 = vadd.f32 %v271, %v291
        %297 = vadd.xlane.f32.xlu0 %v296
        %v298 = vpop.xlane.xlu0 %297
        %v299 = vadd.f32 %v295, %v298
        %vm300 = vcmask 7168
        %301 = vst.msk [vmem:[%s3] sm:$0xff] %vm300, %v299
        %v302 = vld [vmem:[%s4] sm:$0xff]
        %v303 = vmul.f32 %v271, %v271
        %v304 = vmul.f32 %v291, %v291
        %v305 = vadd.f32 %v303, %v304
        %306 = vadd.xlane.f32.xlu0 %v305
        %v307 = vpop.xlane.xlu0 %306
        %v308 = vadd.f32 %v302, %v307
        %309 = vst.msk [vmem:[%s4] sm:$0xff] %vm300, %v308
        %s310 = sand.u32 %s90, 1
        %s311 = scalar_lea.sflag [#allocation3], %s310
        %s312 = sand.u32 %s90, 1
        %s313 = smul.addr %s312, 16
        %s314 = scalar_lea.vmem [#allocation2], %s313
        // Predicated region
        $region33: #{tpu_custom_call.1} parent=27 // pred_check
          %p315 = pneg %p100
        $region34: #{tpu_custom_call.1} parent=27 // pred_check_branch
          %317 = sbr.rel (%p315) target = $region36
        $region35: #{tpu_custom_call.1} parent=27 // pred_region
          %s318 = smul.u32 2, %s24
          %320 = vsyncadd %s311, 0
          %s321 = smul.addr %s23, 2
          %s322 = sadd.s32 %s318, %s321
          %s323 = smul.addr %s322, 8
          %s324 = scalar_lea.hbm %s2, %s323
          %s326 = sshll.u32 %s314, 4
          %s327 = int_to_ptr.vmem [resolvable:$true] %s326
          %s328 = sshll.u32 %s324, 4
          %s329 = int_to_ptr.hbm [resolvable:$true] %s328
          %331 = dma.vmem_to_hbm [thread:$0]  %s327, 256, %s329, %s311
        $region36: #{tpu_custom_call.1} parent=27 // pred_fallthru
          _
        // Predicated region
        $region37: #{tpu_custom_call.1} parent=27 // pred_check
          %p332 = pneg %p121
        $region38: #{tpu_custom_call.1} parent=27 // pred_check_branch
          %334 = sbr.rel (%p332) target = $region40
        $region39: #{tpu_custom_call.1} parent=27 // pred_region
          _
        $region40: #{tpu_custom_call.1} parent=27 // pred_fallthru
          _
        // Predicated region
        $region41: #{tpu_custom_call.1} parent=27 // pred_check
          %p335 = pneg %p142
        $region42: #{tpu_custom_call.1} parent=27 // pred_check_branch
          %337 = sbr.rel (%p335) target = $region44
        $region43: #{tpu_custom_call.1} parent=27 // pred_region
          _
        $region44: #{tpu_custom_call.1} parent=27 // pred_fallthru
          _
        // Predicated region
        $region45: #{tpu_custom_call.1} parent=27 // pred_check
          %p338 = pneg %p121
        $region46: #{tpu_custom_call.1} parent=27 // pred_check_branch
          %340 = sbr.rel (%p338) target = $region48
        $region47: #{tpu_custom_call.1} parent=27 // pred_region
          _
        $region48: #{tpu_custom_call.1} parent=27 // pred_fallthru
          _
        // Predicated region
        $region49: #{tpu_custom_call.1} parent=27 // pred_check
          %p341 = pneg %p142
        $region50: #{tpu_custom_call.1} parent=27 // pred_check_branch
          %343 = sbr.rel (%p341) target = $region52
        $region51: #{tpu_custom_call.1} parent=27 // pred_region
          _
        $region52: #{tpu_custom_call.1} parent=27 // pred_fallthru
          _
      $region28: #{tpu_custom_call.1} parent=5 // pred_fallthru
        _
      %p344 = scmp.le.s32.totalorder 2, %s14
      // Predicated region
      $region53: #{tpu_custom_call.1} parent=5 // pred_check
        %p345 = pneg %p344
      $region54: #{tpu_custom_call.1} parent=5 // pred_check_branch
        %347 = sbr.rel (%p345) target = $region56
      $region55: #{tpu_custom_call.1} parent=5 // pred_region
        %s348 = ssub.s32 %s14, 2
        // Predicated region
        $region57: #{tpu_custom_call.1} parent=55 // pred_check
          %p349 = pneg %p106
        $region58: #{tpu_custom_call.1} parent=55 // pred_check_branch
          %351 = sbr.rel (%p349) target = $region60
        $region59: #{tpu_custom_call.1} parent=55 // pred_region
          %s352 = sand.u32 %s91, 1
          %s353 = scalar_lea.sflag [#allocation3], %s352
          %s354 = sand.u32 %s91, 1
          %s355 = smul.addr %s354, 16
          %s356 = scalar_lea.vmem [#allocation2], %s355
          %358 = dma.done %s353, 256
        $region60: #{tpu_custom_call.1} parent=55 // pred_fallthru
          _
      $region56: #{tpu_custom_call.1} parent=5 // pred_fallthru
        _
    $region6: #{tpu_custom_call.1} parent=1 // loop_footer
      %s18 = sadd.s32 1, %s14
    $region7: #{tpu_custom_call.1} parent=1 // loop_footer_branch
      %13 = sbr.rel target = $region3
    $region8: #{tpu_custom_call.1} parent=1 // loop_exit
      _
    %359 = vsyncpa [#allocation3], 1
    %s360 = scalar_lea.sflag [#allocation3], 1
    %361 = vsyncpa %s360, 1

</llo_original>
